<compile_context>
chip_gen: v7x
topology: tpu7x:2x2x1
jax: 0.10.0
libtpu: 0.0.40
codegen_flags: <defaults>
</compile_context>

<pallas_src>
import functools

import jax
import jax.numpy as jnp
from jax.experimental import pallas as pl
from jax.experimental.pallas import tpu as pltpu


def _round_up(x, m):
    return (x + m - 1) // m * m


def _choose_tn(n, cap=1024):
    """Pick a lane tile (multiple of 128) and the padded lane extent."""
    n128 = _round_up(n, 128)
    if n128 <= cap:
        return n128, n128
    return cap, _round_up(n, cap)


# --------------------------------------------------------------------------
# Pallas kernel: fused GEMM + shift + activation (bf16 operands, f32 acc).
# --------------------------------------------------------------------------

def _gemm_bias_act_kernel(a_ref, b_ref, shift_ref, o_ref, *, act):
    y = jnp.dot(a_ref[...], b_ref[...], preferred_element_type=jnp.float32)
    y = y + shift_ref[...]                       # broadcasts (Mp,1) or (1,tn)
    if act == "relu":
        y = jnp.maximum(y, 0.0)
    elif act == "sigmoid":
        y = jax.nn.sigmoid(y)
    elif act == "relu_sigmoid":                  # decoder last layer: ReLU, Sigmoid
        y = jax.nn.sigmoid(jnp.maximum(y, 0.0))
    o_ref[...] = y.astype(o_ref.dtype)


def _gemm_call(a_p, b_p, shift_p, shift_block, shift_map, act, tn):
    Mp, K = a_p.shape
    _, Np = b_p.shape
    return pl.pallas_call(
        functools.partial(_gemm_bias_act_kernel, act=act),
        out_shape=jax.ShapeDtypeStruct((Mp, Np), jnp.float32),
        grid=(Np // tn,),
        in_specs=[
            pl.BlockSpec((Mp, K), lambda j: (0, 0)),   # small operand: resident
            pl.BlockSpec((K, tn), lambda j: (0, j)),   # streamed over lanes
            pl.BlockSpec(shift_block, shift_map),
        ],
        out_specs=pl.BlockSpec((Mp, tn), lambda j: (0, j)),
        compiler_params=pltpu.CompilerParams(
            dimension_semantics=("parallel",)),
    )(a_p, b_p, shift_p)


def gemm_rowbias(a, b, shift, act="none", cap_tn=1024):
    """out = act(a @ b + shift[:, None]).

    a: (M, K) small weight matrix (M = phases*channels), b: (K, S) im2col with
    the large spatial dim on the lane axis -> lane-dense unmasked stores."""
    M, K = a.shape
    K2, S = b.shape
    assert K == K2
    Mp = _round_up(M, 8)
    tn, Sp = _choose_tn(S, cap_tn)
    a_p = jnp.pad(a.astype(jnp.bfloat16), ((0, Mp - M), (0, 0)))
    b_p = jnp.pad(b.astype(jnp.bfloat16), ((0, 0), (0, Sp - S)))
    shift_p = jnp.pad(shift.astype(jnp.float32), (0, Mp - M)).reshape(Mp, 1)
    out = _gemm_call(a_p, b_p, shift_p, (Mp, 1), lambda j: (0, 0), act, tn)
    return out[:M, :S]


def gemm_colbias(a, b, shift, act="none", cap_tn=1024):
    """out = act(a @ b + shift[None, :]); a: (M, K) with small M (batch rows)."""
    M, K = a.shape
    K2, N = b.shape
    assert K == K2
    Mp = _round_up(M, 8)
    tn, Np = _choose_tn(N, cap_tn)
    a_p = jnp.pad(a.astype(jnp.bfloat16), ((0, Mp - M), (0, 0)))
    b_p = jnp.pad(b.astype(jnp.bfloat16), ((0, 0), (0, Np - N)))
    shift_p = jnp.pad(shift.astype(jnp.float32), (0, Np - N)).reshape(1, Np)
    out = _gemm_call(a_p, b_p, shift_p, (1, tn), lambda j: (0, j), act, tn)
    return out[:M, :N]


# --------------------------------------------------------------------------
# Conv-transpose layers (glue = phase decomposition, compute = Pallas GEMM)
# --------------------------------------------------------------------------

def convt_1x1_to_7x7(z, w, bias):
    """ConvTranspose2d(192, 96, 7, 1, 0) on a (B, 192, 1, 1) latent == GEMM."""
    B, cin = z.shape
    cout = w.shape[1]
    w_mat = w.reshape(cin, cout * 49)              # col = co*49 + ky*7 + kx
    shift = jnp.repeat(bias, 49)
    out = gemm_colbias(z, w_mat, shift, act="none")
    out = out.reshape(B, cout, 7, 7)               # NCHW
    return jnp.transpose(out, (0, 2, 3, 1))        # -> NHWC


def conv_transpose_s2_k4_p1(x_nhwc, w, scale, shift, act):
    """ConvTranspose2d(Cin, Cout, 4, stride=2, padding=1) in NHWC.

    Sub-pixel phase decomposition: output phase (py, px) at (2m+py, 2n+px) is
    a 2x2 correlation of the 1-padded input window at base (m+py, n+px) with
    kernel taps w[:, :, 3-2*dy-py, 3-2*dx-px].  One GEMM (K = 4*Cin,
    rows = 4 phases * Cout, lanes = spatial), then pixel-shuffle.
    w: (Cin, Cout, 4, 4) PyTorch layout; BN scale folded into the weights,
    shift (= beta + scale*(conv_bias - mean)) added in the kernel epilogue."""
    B, H, W_, cin = x_nhwc.shape
    cout = w.shape[1]
    Hw, Ww = H + 1, W_ + 1

    # K-major im2col of 2x2 windows of the 1-padded input: (4*Cin, B*Hw*Ww).
    xp = jnp.pad(x_nhwc, ((0, 0), (1, 1), (1, 1), (0, 0)))
    taps = [xp[:, dy:dy + Hw, dx:dx + Ww, :]
            for dy in range(2) for dx in range(2)]            # each (B,Hw,Ww,cin)
    at = jnp.stack(taps, axis=0)                              # (4,B,Hw,Ww,cin)
    at = jnp.transpose(at, (0, 4, 1, 2, 3)).reshape(4 * cin, B * Hw * Ww)

    # Phase-decomposed weights: wm[(py*2+px)*cout+co, (dy*2+dx)*cin+ci]
    #   = w[ci, co, 3-2*dy-py, 3-2*dx-px]
    w_r = w[:, :, ::-1, ::-1].reshape(cin, cout, 2, 2, 2, 2)  # (ci,co,dy,py,dx,px)
    wm = jnp.transpose(w_r, (3, 5, 1, 2, 4, 0)).reshape(4 * cout, 4 * cin)
    wm = wm * jnp.tile(scale, 4)[:, None]                     # fold BN scale
    shift_rows = jnp.tile(shift, 4)

    c = gemm_rowbias(wm, at, shift_rows, act=act)             # (4*cout, B*Hw*Ww)
    c = c.reshape(2, 2, cout, B, Hw, Ww)

    # Pixel-shuffle: y[b, 2m+py, 2n+px, co] = c[py, px, co, b, m+py, n+px]
    slabs = [jnp.transpose(c[py, px, :, :, py:py + H, px:px + W_], (1, 2, 3, 0))
             for py in range(2) for px in range(2)]           # each (B,H,W,cout)
    arr = jnp.stack(slabs, axis=3).reshape(B, H, W_, 2, 2, cout)
    return jnp.transpose(arr, (0, 1, 3, 2, 4, 5)).reshape(B, 2 * H, 2 * W_, cout)


# --------------------------------------------------------------------------
# DINO surrogate encoder
# --------------------------------------------------------------------------

def dino_pooled(x_nchw, p):
    """Deterministic stand-in for the torch.hub DINOv2 ViT-S/14 backbone,
    up to (but not including) its linear head: 14x14 stride-14 patch embedding
    to 384-d tokens (Pallas GEMM), LayerNorm, token mean-pool."""
    # TODO(synk): the pretrained DINOv2 transformer (12 attention blocks, hub
    # weights) has no in-script equivalent; this surrogate preserves shapes.
    B, C, H, W = x_nchw.shape
    P = 14
    gh, gw = H // P, W // P
    x = jnp.transpose(x_nchw, (0, 2, 3, 1)).reshape(B, gh, P, gw, P, C)
    patches = jnp.transpose(x, (0, 1, 3, 2, 4, 5)).reshape(B * gh * gw, P * P * C)
    tok = gemm_colbias(patches, p["w_patch"], p["b_patch"], act="none")
    tok = tok.reshape(B, gh * gw, 384)
    mean = tok.mean(-1, keepdims=True)
    var = ((tok - mean) ** 2).mean(-1, keepdims=True)
    tok = (tok - mean) / jnp.sqrt(var + 1e-6)
    return tok.mean(axis=1)                                   # (B, 384)


# --------------------------------------------------------------------------
# UBC forward
# --------------------------------------------------------------------------

@functools.partial(jax.jit, static_argnames=("z_dim",))
def ubc_forward(x, x_glb, params, z_dim=192):
    # encoder: dino(x), dino(x_glb), 0.75/0.25 mix.  The surrogate head is
    # linear, so the mix commutes with it: mix the pooled features (tiny XLA
    # elementwise) and run the head GEMM once (removes the old mix kernel).
    pooled = (0.75 * dino_pooled(x, params["dino"])
              + 0.25 * dino_pooled(x_glb, params["dino"]))
    mixed = gemm_colbias(pooled, params["dino"]["w_head"],
                         params["dino"]["b_head"], act="none")   # (B, 2*z_dim)
    mu = mixed[:, :z_dim]
    logvar = mixed[:, z_dim:]

    # reparameterize (eval mode): z = mu
    z = mu

    # decoder: ConvT(192,96,7,1,0), then 5x [ConvT(k4,s2,p1)+BN+ReLU], Sigmoid.
    d = params["dec"]
    h = convt_1x1_to_7x7(z, d[0]["w"], d[0]["b"])                # (B, 7, 7, 96)
    for li in range(1, 6):
        act = "relu" if li < 5 else "relu_sigmoid"               # final Sigmoid fused
        h = conv_transpose_s2_k4_p1(h, d[li]["w"], d[li]["scale"],
                                    d[li]["shift"], act)
    recon = jnp.transpose(h, (0, 3, 1, 2))                       # NHWC -> NCHW

    B = x.shape[0]
    mu4 = mu.reshape(B, z_dim, 1, 1)
    logvar4 = logvar.reshape(B, z_dim, 1, 1)
    return recon, (mu4, logvar4)


# --------------------------------------------------------------------------
# Deterministic parameter init (shapes from UBC.__init__)
# --------------------------------------------------------------------------

def init_params(key):
    keys = jax.random.split(key, 16)

    def nrm(k, shape, s=0.05):
        return (s * jax.random.normal(k, shape)).astype(jnp.float32)

    dino = {
        "w_patch": nrm(keys[0], (14 * 14 * 3, 384)),
        "b_patch": nrm(keys[1], (384,)),
        "w_head":  nrm(keys[2], (384, 384)),
        "b_head":  nrm(keys[3], (384,)),
    }

    dec = []
    # layer 0: ConvTranspose2d(192, 96, 7, 1, 0) with bias, no BN/ReLU
    dec.append({"w": nrm(keys[4], (192, 96, 7, 7)), "b": nrm(keys[5], (96,))})

    eps = 1e-5
    chans = [(96, 48), (48, 24), (24, 12), (12, 6), (6, 3)]
    for li, (cin, cout) in enumerate(chans):
        kw, kb = jax.random.split(keys[6 + li], 2)
        w = nrm(kw, (cin, cout, 4, 4))
        bias = nrm(kb, (cout,))
        # BatchNorm2d eval-mode defaults: weight=1, bias=0, mean=0, var=1
        gamma = jnp.ones((cout,), jnp.float32)
        beta = jnp.zeros((cout,), jnp.float32)
        rmean = jnp.zeros((cout,), jnp.float32)
        rvar = jnp.ones((cout,), jnp.float32)
        scale = gamma / jnp.sqrt(rvar + eps)
        shift = beta + scale * (bias - rmean)
        dec.append({"w": w, "scale": scale, "shift": shift})

    return {"dino": dino, "dec": dec}


# --------------------------------------------------------------------------
# Self-check reference: dilate + pad + flipped-correlation ConvT(k4,s2,p1)
# (pure jnp, with the same bf16 input rounding as the Pallas path).
# --------------------------------------------------------------------------

def _convt_reference(x_nhwc, w, shift, act):
    B, H, W_, cin = x_nhwc.shape
    cout = w.shape[1]
    xb = x_nhwc.astype(jnp.bfloat16).astype(jnp.float32)
    wb = w.astype(jnp.bfloat16).astype(jnp.float32)
    xd = jnp.zeros((B, 2 * H - 1, 2 * W_ - 1, cin), jnp.float32)
    xd = xd.at[:, ::2, ::2, :].set(xb)
    xp = jnp.pad(xd, ((0, 0), (2, 2), (2, 2), (0, 0)))
    OH, OW = 2 * H, 2 * W_
    wf = wb[:, :, ::-1, ::-1]
    y = jnp.zeros((B, OH, OW, cout), jnp.float32)
    for dy in range(4):
        for dx in range(4):
            y = y + jnp.einsum("bhwc,cd->bhwd",
                               xp[:, dy:dy + OH, dx:dx + OW, :], wf[:, :, dy, dx])
    y = y + shift
    return jnp.maximum(y, 0.0) if act == "relu" else y


if __name__ == "__main__":
    key = jax.random.PRNGKey(0)
    kp, kx, kg, kt1, kt2, kt3 = jax.random.split(key, 6)
    params = init_params(kp)

    # Self-check: phase-decomposed Pallas ConvT vs plain dilate+correlate ref.
    xt = jax.random.uniform(kt1, (1, 5, 5, 6), jnp.float32)
    wt = 0.05 * jax.random.normal(kt2, (6, 3, 4, 4), jnp.float32)
    st = 0.05 * jax.random.normal(kt3, (3,), jnp.float32)
    y_k = conv_transpose_s2_k4_p1(xt, wt, jnp.ones((3,), jnp.float32), st, "relu")
    y_r = _convt_reference(xt, wt, st, "relu")
    assert y_k.shape == y_r.shape == (1, 10, 10, 3)
    assert float(jnp.max(jnp.abs(y_k - y_r))) < 1e-3

    # small inputs: DINOv2 patch size 14 -> 28x28 images, 3 channels, B=2
    x = jax.random.uniform(kx, (2, 3, 28, 28), jnp.float32)
    x_glb = jax.random.uniform(kg, (2, 3, 28, 28), jnp.float32)

    recon, (mu, logvar) = ubc_forward(x, x_glb, params)
    jax.block_until_ready(recon)
    jax.block_until_ready(mu)
    jax.block_until_ready(logvar)

    assert recon.shape == (2, 3, 224, 224)
    assert mu.shape == (2, 192, 1, 1)
    assert logvar.shape == (2, 192, 1, 1)
    assert bool(jnp.all((recon >= 0.0) & (recon <= 1.0)))
    print("KERNEL_OK")
</pallas_src>

<mosaic_0001>
module attributes {stable_mosaic.version = 11 : i64} {
  func.func @_gemm_bias_act_kernel(%arg0: i32, %arg1: memref<16x24xbf16, #tpu.memory_space<vmem>>, %arg2: memref<24x128xbf16, #tpu.memory_space<vmem>>, %arg3: memref<16x1xf32, #tpu.memory_space<vmem>>, %arg4: memref<16x128xf32, #tpu.memory_space<vmem>>) attributes {dimension_semantics = [#tpu.dimension_semantics<parallel>], iteration_bounds = array<i64: 1>, scalar_prefetch = 0 : i64, scratch_operands = 0 : i64, tpu.core_type = #tpu.core_type<tc>, window_params = [{pipeline_mode = #tpu.pipeline_mode<synchronous>, transform_indices = @transform_0, window_bounds = array<i64: 16, 24>}, {transform_indices = @transform_1, window_bounds = array<i64: 24, 128>}, {pipeline_mode = #tpu.pipeline_mode<synchronous>, transform_indices = @transform_2, window_bounds = array<i64: 16, 1>}, {transform_indices = @transform_3, window_bounds = array<i64: 16, 128>}]} {
    %c0 = arith.constant 0 : index
    %c0_0 = arith.constant 0 : index
    %0 = vector.load %arg1[%c0, %c0_0] : memref<16x24xbf16, #tpu.memory_space<vmem>>, vector<16x24xbf16>
    %c0_1 = arith.constant 0 : index
    %c0_2 = arith.constant 0 : index
    %1 = vector.load %arg2[%c0_1, %c0_2] : memref<24x128xbf16, #tpu.memory_space<vmem>>, vector<24x128xbf16>
    %cst = arith.constant dense<0.000000e+00> : vector<16x128xf32>
    %2 = tpu.matmul %0, %1, %cst {dimension_numbers = #tpu.dot_dimension_numbers<[1], [0], [0], [1], [0, 0, 1, 1], [], []>} : vector<16x24xbf16>, vector<24x128xbf16>, vector<16x128xf32> -> vector<16x128xf32>
    %c0_3 = arith.constant 0 : index
    %c0_4 = arith.constant 0 : index
    %3 = vector.load %arg3[%c0_3, %c0_4] : memref<16x1xf32, #tpu.memory_space<vmem>>, vector<16x1xf32>
    %4 = vector.broadcast %3 : vector<16x1xf32> to vector<16x128xf32>
    %5 = arith.addf %2, %4 : vector<16x128xf32>
    %cst_5 = arith.constant 0.000000e+00 : f32
    %6 = vector.broadcast %cst_5 : f32 to vector<16x128xf32>
    %7 = arith.maximumf %5, %6 : vector<16x128xf32>
    %c0_6 = arith.constant 0 : index
    %c0_7 = arith.constant 0 : index
    %8 = vector.load %arg4[%c0_6, %c0_7] : memref<16x128xf32, #tpu.memory_space<vmem>>, vector<16x128xf32>
    tpu.vector_store %arg4[%c0_6, %c0_7], %7 {strides = array<i32>} : memref<16x128xf32, #tpu.memory_space<vmem>>, vector<16x128xf32>,
    return
  }
  func.func @transform_0(%arg0: i32) -> (i32, i32) {
    %c0_i32 = arith.constant 0 : i32
    %c0_i32_0 = arith.constant 0 : i32
    %c0_i32_1 = arith.constant 0 : i32
    return %c0_i32, %c0_i32_0 : i32, i32
  }
  func.func @transform_1(%arg0: i32) -> (i32, i32) {
    %c0_i32 = arith.constant 0 : i32
    %c0_i32_0 = arith.constant 0 : i32
    return %c0_i32, %arg0 : i32, i32
  }
  func.func @transform_2(%arg0: i32) -> (i32, i32) {
    %c0_i32 = arith.constant 0 : i32
    %c0_i32_0 = arith.constant 0 : i32
    %c0_i32_1 = arith.constant 0 : i32
    return %c0_i32, %c0_i32_0 : i32, i32
  }
  func.func @transform_3(%arg0: i32) -> (i32, i32) {
    %c0_i32 = arith.constant 0 : i32
    %c0_i32_0 = arith.constant 0 : i32
    return %c0_i32, %arg0 : i32, i32
  }
}

</mosaic_0001>

<llo_original>
// kernel: tpu_custom_call.1
$region0: #{tpu_custom_call.1}
  #allocation0 [shape = 'u32[]', space=smem, size = 0x4, offset = 0x4, fixed_abs, tag = 'smem constant byte address 0x4 - core index']
  #allocation1 [shape = 'u32[144,128]{1,0:T(1,128)}', space=vmem, size = 0x12000, scoped, tag = 'internal scratch']
  %s0 = inlined_call_operand.vmem [shape: bf16[16,24], index: 0, kind: input, shape index: {}]
  %s1 = inlined_call_operand.vmem [shape: bf16[24,128], index: 1, kind: input, shape index: {}]
  %s2 = inlined_call_operand.vmem [shape: f32[16,1], index: 2, kind: input, shape index: {}]
  %s3 = inlined_call_operand.hbm [shape: f32[16,128], index: 3, kind: output, shape index: {}]
  %s4 = sld [smem:[#allocation0]]
  $region22: #{tpu_custom_call.1} parent=0
    _
  %s6 = ssub.s32 1, %s4
  %s7 = scalar_select 0, %s6, %s4
  $region1: #{tpu_custom_call.1} parent=0
    #allocation2 [shape = 'u8[8192]{0}', space=vmem, size = 0x2000, scoped, tag = 'output window, operand 0, single buffered']
    #allocation3 [shape = 's32[1]{0}', space=sflag, size = 0x4, scoped, tag = 'scoped memory for tpu_custom_call.1']
    %8 = vsyncpa [#allocation3], 0
    // Predicated region
    $region2: #{tpu_custom_call.1} parent=1 // pred_check
      _
    $region3: #{tpu_custom_call.1} parent=1 // pred_check_branch
      %10 = sbr.rel (0) target = $region5
    $region4: #{tpu_custom_call.1} parent=1 // pred_region
      _
    $region5: #{tpu_custom_call.1} parent=1 // pred_fallthru
      _
    // Predicated region
    $region6: #{tpu_custom_call.1} parent=1 // pred_check
      _
    $region7: #{tpu_custom_call.1} parent=1 // pred_check_branch
      %12 = sbr.rel (0) target = $region9
    $region8: #{tpu_custom_call.1} parent=1 // pred_region
      _
    $region9: #{tpu_custom_call.1} parent=1 // pred_fallthru
      _
    // Predicated region
    $region10: #{tpu_custom_call.1} parent=1 // pred_check
      _
    $region11: #{tpu_custom_call.1} parent=1 // pred_check_branch
      %14 = sbr.rel (0) target = $region13
    $region12: #{tpu_custom_call.1} parent=1 // pred_region
      _
    $region13: #{tpu_custom_call.1} parent=1 // pred_fallthru
      _
    %v16 = vld [vmem:[%s0] sm:$0xf]
    %v17 = vld [vmem:[%s0 + $0x4] sm:$0xf]
    %v18 = vld [vmem:[%s1] sm:$0xf]
    %v19 = vld [vmem:[%s1 + $0x4] sm:$0xf]
    %v20 = vld [vmem:[%s1 + $0x8] sm:$0xf]
    %v21 = vld [vmem:[%s2] sm:$0xff]
    %v22 = vld [vmem:[%s2 + $0x8] sm:$0xff]
    %24 = vset.pattern.permute.xlu0 0
    %25 = vperm.xlu0 %24, %v21
    %v26 = vpop.permute.xlu0 %25
    %29 = vset.pattern.permute.xlu0 0
    %30 = vperm.xlu0 %29, %v22
    %v31 = vpop.permute.xlu0 %30
    %v35 = vunpack.c.l.b16 %v16
    %v36 = vunpack.c.l.b16 %v17
    %v37 = vpack.c.b16 %v36, %v35
    %v41 = vunpack.c.l.b16 %v18
    %v42 = vunpack.c.l.b16 %v19
    %v43 = vunpack.c.l.b16 %v20
    %v44 = vpack.c.b16 %v42, %v41
    %v45 = vpack.c.b16 %v43, %v43
    %vm47 = vcmask 195584
    %v49 = vsel %vm47, %v37, 0
    %vm51 = vcmask 1043456
    %v53 = vsel %vm51, %v45, 0
    %55 = vmatprep.subr.bf16.mxu0 0
    %56 = vmatpush1.bf16.msra.mxu0 %v44
    %57 = vmatprep.subr.bf16.mxu0 0
    %58 = vmatpush1.bf16.msra.mxu0 %v53
    %59 = vmatprep.subr.bf16.mxu0 0
    %60 = vmatpush1.bf16.msra.mxu0 0
    %61 = vmatprep.subr.bf16.mxu0 0
    %62 = vmatpush1.bf16.msra.mxu0 0
    %63 = vmatprep.subr.bf16.mxu0 0
    %64 = vmatpush1.bf16.msra.mxu0 0
    %65 = vmatprep.subr.bf16.mxu0 0
    %66 = vmatpush1.bf16.msra.mxu0 0
    %67 = vmatprep.subr.bf16.mxu0 0
    %68 = vmatpush1.bf16.msra.mxu0 0
    %69 = vmatprep.subr.bf16.mxu0 0
    %70 = vmatpush1.bf16.msra.mxu0 0
    %71 = vmatprep.subr.bf16.mxu0 0
    %72 = vmatpush1.bf16.msra.mxu0 0
    %73 = vmatprep.subr.bf16.mxu0 0
    %74 = vmatpush1.bf16.msra.mxu0 0
    %75 = vmatprep.subr.bf16.mxu0 0
    %76 = vmatpush1.bf16.msra.mxu0 0
    %77 = vmatprep.subr.bf16.mxu0 0
    %78 = vmatpush1.bf16.msra.mxu0 0
    %79 = vmatprep.subr.bf16.mxu0 0
    %80 = vmatpush1.bf16.msra.mxu0 0
    %81 = vmatprep.subr.bf16.mxu0 0
    %82 = vmatpush1.bf16.msra.mxu0 0
    %83 = vmatprep.subr.bf16.mxu0 0
    %84 = vmatpush1.bf16.msra.mxu0 0
    %85 = vmatprep.subr.bf16.mxu0 0
    %86 = vmatpush1.bf16.msra.mxu0 0
    %87 = vmatprep.mubr.bf16.mxu0 0
    %88 = vmatmul.mubr.bf16.gmra.mrb[0].mxu0 %v49
    %v89 = vpop.f32.mrb[0].mxu0
    %v90 = vadd.f32 %v26, %v89
    %v91 = vpop.f32.mrb[0].mxu0
    %v92 = vpop.f32.mrb[0].mxu0
    %v93 = vadd.f32 %v31, %v92
    %v94 = vpop.f32.mrb[0].mxu0
    %95 = vdwg.mxu0
    %v96 = vmax.f32 %v90, 0.0
    %v97 = vmax.f32 %v93, 0.0
    %98 = vst [vmem:[#allocation2] sm:$0xff] %v96
    %99 = vst [vmem:[#allocation2 + $0x8] sm:$0xff] %v97
    // Predicated region
    $region14: #{tpu_custom_call.1} parent=1 // pred_check
      _
    $region15: #{tpu_custom_call.1} parent=1 // pred_check_branch
      %101 = sbr.rel (0) target = $region17
    $region16: #{tpu_custom_call.1} parent=1 // pred_region
      %s103 = ssub.s32 256, 256
      %104 = vsyncadd [#allocation3], %s103
      %s105 = sshll.u32 [#allocation2], 4
      %s106 = int_to_ptr.vmem [resolvable:$true] %s105
      %111 = dma.vmem_to_hbm [thread:$0]  %s106, 256, %s3, [#allocation3], 128, 128, 8
    $region17: #{tpu_custom_call.1} parent=1 // pred_fallthru
      _
    // Predicated region
    $region18: #{tpu_custom_call.1} parent=1 // pred_check
      _
    $region19: #{tpu_custom_call.1} parent=1 // pred_check_branch
      %113 = sbr.rel (0) target = $region21
    $region20: #{tpu_custom_call.1} parent=1 // pred_region
      %114 = dma.done [#allocation3], 256
    $region21: #{tpu_custom_call.1} parent=1 // pred_fallthru
      _
    %115 = vsyncpa [#allocation3], 1

</llo_original>
